<compile_context>
chip_gen: v6e
topology: v6e:2x2x1
jax: 0.10.0
libtpu: 0.0.40
codegen_flags: <defaults>
</compile_context>

<pallas_src>
import functools

import jax
import jax.numpy as jnp
from jax import lax
from jax.experimental import pallas as pl
from jax.experimental.pallas import tpu as pltpu

MID_DIM = 128
BN_EPS = 1e-5
ACC_ROWS = 8                      # f32 sublane rows of the partial-sum accumulators
VMEM_LIMIT = 32 * 1024 * 1024     # explicit scoped-VMEM budget (fits all generations)


def _round_up(x, m):
    return ((x + m - 1) // m) * m


def _sublane_multiple(dtype):
    # second-to-last-dim tiling multiple: 8 (32-bit), 16 (16-bit), 32 (8-bit)
    return max(8, 32 // jnp.dtype(dtype).itemsize)


def _pick_tile_n(n, c, dtype):
    """Pick a row-tile size: big enough to amortize the ~0.35us/step grid
    overhead, small enough that double-buffered (tile_n, C) operands plus the
    (tile_n, 128) f32 intermediate stay well under VMEM_LIMIT."""
    sub = _sublane_multiple(dtype)
    itemsize = jnp.dtype(dtype).itemsize
    budget = 3 * 1024 * 1024                      # per (tile_n, C) buffer
    cap = max(sub, budget // max(1, c * itemsize))
    tn = min(2048, cap)
    tn = max(sub, (tn // sub) * sub)
    if n < tn:
        tn = _round_up(max(n, 1), sub)
    return tn


# ---------------- phase 1: batch statistics over the N (row) axis -----------
def _stats_kernel(x_ref, w1_ref, sum_ref, sumsq_ref, *,
                  tile_n, n_rows, tiles_per_core, needs_mask):
    # x_ref: (tile_n, C)   w1_ref: (C, MID)
    # sum_ref / sumsq_ref: (ACC_ROWS, MID) per-core resident f32 accumulators.
    core = pl.program_id(0)
    step = pl.program_id(1)

    @pl.when(step == 0)
    def _():
        sum_ref[...] = jnp.zeros_like(sum_ref)
        sumsq_ref[...] = jnp.zeros_like(sumsq_ref)

    xv = x_ref[...]
    if needs_mask:
        # Mask rows past the real N (ragged last tile, and fully-OOB duplicated
        # tiles that the 2-core split may produce); unmasked garbage rows would
        # corrupt the batch statistics.
        tile = core * tiles_per_core + step
        row_ids = tile * tile_n + lax.broadcasted_iota(jnp.int32, (tile_n, 1), 0)
        xv = jnp.where(row_ids < n_rows, xv, jnp.zeros_like(xv))

    h = jnp.dot(xv, w1_ref[...], preferred_element_type=jnp.float32)

    # (8, 128) per-sublane partial sums: pure VPU vreg adds; the single
    # cross-sublane reduce happens once in the JAX fold step.
    hr = h.reshape(tile_n // ACC_ROWS, ACC_ROWS, MID_DIM)
    sum_ref[...] += jnp.sum(hr, axis=0)
    sumsq_ref[...] += jnp.sum(hr * hr, axis=0)


# ---------------- phase 2: folded BN + ReLU + second matmul ------------------
def _apply_kernel(shift_ref, x_ref, w1s_ref, w2_ref, o_ref):
    # shift: (1, MID) f32; x: (tile_n, C); w1s: (C, MID) (BN scale pre-folded);
    # w2: (MID, C); o: (tile_n, C).  OOB rows of the last tile produce garbage
    # that is dropped on writeback.
    h = jnp.dot(x_ref[...], w1s_ref[...], preferred_element_type=jnp.float32)
    h = jnp.maximum(h + shift_ref[...], 0.0)
    y = jnp.dot(h.astype(w2_ref.dtype), w2_ref[...],
                preferred_element_type=jnp.float32)
    o_ref[...] = y.astype(o_ref.dtype)


def predictor_pallas(x, w1_t, w2_t, gamma, beta, tile_n=None):
    """x: (B, L, C) or (B, C).  w1_t: (C, MID), w2_t: (MID, C) (pre-transposed
    PyTorch weights), gamma/beta: (1, MID).  Matches the PyTorch forward
    (training-mode batch statistics)."""
    squeeze_flag = False
    if x.ndim == 2:
        x = x[:, None, :]
        squeeze_flag = True
    B, L, C = x.shape
    N = B * L
    xf = x.reshape(N, C)
    dt = xf.dtype

    tn = _pick_tile_n(N, C, dt) if tile_n is None else int(tile_n)
    num_tiles = pl.cdiv(N, tn)
    # Split phase 1 across 2 TensorCores (v7x); harmless on single-TC chips.
    ncores = 2 if num_tiles >= 2 else 1
    tiles_per_core = pl.cdiv(num_tiles, ncores)
    needs_mask = (num_tiles * tn != N) or (ncores * tiles_per_core != num_tiles)

    w1c = w1_t.astype(dt)

    def x_map1(c, i):
        # clamp duplicated tail tiles of the 2-core split back in range;
        # their rows are fully masked in-kernel so they contribute nothing.
        return (jnp.minimum(c * tiles_per_core + i, num_tiles - 1), 0)

    # ---- phase 1: accumulate per-core partial sum(h), sum(h*h) ----
    sums, sumsq = pl.pallas_call(
        functools.partial(_stats_kernel, tile_n=tn, n_rows=N,
                          tiles_per_core=tiles_per_core, needs_mask=needs_mask),
        out_shape=(jax.ShapeDtypeStruct((ncores * ACC_ROWS, MID_DIM), jnp.float32),
                   jax.ShapeDtypeStruct((ncores * ACC_ROWS, MID_DIM), jnp.float32)),
        grid=(ncores, tiles_per_core),
        in_specs=[
            pl.BlockSpec((tn, C), x_map1),
            pl.BlockSpec((C, MID_DIM), lambda c, i: (0, 0)),
        ],
        out_specs=(
            pl.BlockSpec((ACC_ROWS, MID_DIM), lambda c, i: (c, 0)),
            pl.BlockSpec((ACC_ROWS, MID_DIM), lambda c, i: (c, 0)),
        ),
        compiler_params=pltpu.CompilerParams(
            dimension_semantics=("parallel", "arbitrary"),
            vmem_limit_bytes=VMEM_LIMIT),
    )(xf, w1c)

    # ---- fold BN: per-column scale folded into W1, plus an additive shift ----
    inv_n = 1.0 / jnp.float32(N)                 # real N; masked rows added 0
    sum_t = jnp.sum(sums, axis=0, keepdims=True)      # (1, MID)
    sumsq_t = jnp.sum(sumsq, axis=0, keepdims=True)
    mean = sum_t * inv_n
    # TODO(synk): one-pass E[h^2]-mean^2 in f32 loses precision when |mean|>>std;
    # a shifted/two-pass accumulation would be more robust for extreme inputs.
    var = jnp.maximum(sumsq_t * inv_n - mean * mean, 0.0)
    scale = gamma.astype(jnp.float32) * lax.rsqrt(var + BN_EPS)
    shift = beta.astype(jnp.float32) - mean * scale
    w1_scaled = (w1_t.astype(jnp.float32) * scale).astype(dt)
    w2c = w2_t.astype(dt)
    # TODO(synk): BatchNorm running_mean/running_var buffer updates are stateful
    # training bookkeeping and do not affect the forward output; omitted.

    # ---- phase 2: per-tile (x@W1s + shift) -> ReLU -> @W2 (parallel tiles) ----
    y = pl.pallas_call(
        _apply_kernel,
        out_shape=jax.ShapeDtypeStruct((N, C), dt),
        grid=(num_tiles,),
        in_specs=[
            pl.BlockSpec((1, MID_DIM), lambda i: (0, 0)),
            pl.BlockSpec((tn, C), lambda i: (i, 0)),
            pl.BlockSpec((C, MID_DIM), lambda i: (0, 0)),
            pl.BlockSpec((MID_DIM, C), lambda i: (0, 0)),
        ],
        out_specs=pl.BlockSpec((tn, C), lambda i: (i, 0)),
        compiler_params=pltpu.CompilerParams(
            dimension_semantics=("parallel",),
            vmem_limit_bytes=VMEM_LIMIT),
    )(shift, xf, w1_scaled, w2c)

    out = y.reshape(B, L, C)
    if squeeze_flag:
        out = out[:, 0, :]
    return out


def predictor_reference(x, w1_t, w2_t, gamma, beta):
    """Pure-JAX reference mirroring the PyTorch forward (training-mode BN)."""
    squeeze_flag = False
    if x.ndim == 2:
        x = x[:, None, :]
        squeeze_flag = True
    B, L, C = x.shape
    xf = x.reshape(B * L, C)
    h = xf @ w1_t
    mean = jnp.mean(h, axis=0, keepdims=True)
    var = jnp.mean((h - mean) ** 2, axis=0, keepdims=True)
    h = (h - mean) / jnp.sqrt(var + BN_EPS) * gamma + beta
    h = jnp.maximum(h, 0.0)
    y = h @ w2_t
    y = y.reshape(B, L, C)
    if squeeze_flag:
        y = y[:, 0, :]
    return y


if __name__ == "__main__":
    # Small shapes consistent with the module: B*L*C sequence input, in_dim=32.
    B, L, C = 2, 8, 32  # N = B*L = 16
    key = jax.random.PRNGKey(0)
    kx, k1, k2, kg, kb, kx2 = jax.random.split(key, 6)

    x = jax.random.normal(kx, (B, L, C), dtype=jnp.float32)

    # PyTorch-style init: nn.Linear(in, out, bias=False).weight ~ U(+-1/sqrt(in))
    bound1 = 1.0 / jnp.sqrt(jnp.float32(C))
    w1 = jax.random.uniform(k1, (MID_DIM, C), jnp.float32, -bound1, bound1)
    bound2 = 1.0 / jnp.sqrt(jnp.float32(MID_DIM))
    w2 = jax.random.uniform(k2, (C, MID_DIM), jnp.float32, -bound2, bound2)
    # Non-trivial BN affine params to exercise the scale/shift folding.
    gamma = jax.random.uniform(kg, (1, MID_DIM), jnp.float32, 0.5, 1.5)
    beta = 0.1 * jax.random.normal(kb, (1, MID_DIM), jnp.float32)

    # Pre-transpose weights for row-major matmuls inside the kernel.
    w1_t = w1.T  # (C, MID)
    w2_t = w2.T  # (MID, C)

    # --- 3-D path (single tile) ---
    out = jax.block_until_ready(predictor_pallas(x, w1_t, w2_t, gamma, beta))
    ref = predictor_reference(x, w1_t, w2_t, gamma, beta)
    assert out.shape == (B, L, C)
    assert jnp.allclose(out, ref, atol=2e-4, rtol=2e-4), "mismatch vs reference (3D)"

    # --- 2-D (squeeze) path, tiny N (block overhangs the array) ---
    out2d = jax.block_until_ready(
        predictor_pallas(x[:, 0, :], w1_t, w2_t, gamma, beta))
    ref2d = predictor_reference(x[:, 0, :], w1_t, w2_t, gamma, beta)
    assert out2d.shape == (B, C)
    assert jnp.allclose(out2d, ref2d, atol=2e-4, rtol=2e-4), "mismatch vs reference (2D)"

    # --- multi-tile + ragged last tile + 2-core split path ---
    Bm, Lm = 2, 300  # N = 600, tile_n=256 -> 3 tiles (odd -> split clamps a tile)
    xm = jax.random.normal(kx2, (Bm, Lm, C), dtype=jnp.float32)
    outm = jax.block_until_ready(
        predictor_pallas(xm, w1_t, w2_t, gamma, beta, tile_n=256))
    refm = predictor_reference(xm, w1_t, w2_t, gamma, beta)
    assert outm.shape == (Bm, Lm, C)
    assert jnp.allclose(outm, refm, atol=2e-4, rtol=2e-4), "mismatch vs reference (tiled)"

    # --- same shape through the default (auto) tile picker ---
    outd = jax.block_until_ready(predictor_pallas(xm, w1_t, w2_t, gamma, beta))
    assert jnp.allclose(outd, refm, atol=2e-4, rtol=2e-4), "mismatch vs reference (auto)"

    print("KERNEL_OK")
</pallas_src>

<mosaic_0001>
module attributes {stable_mosaic.version = 11 : i64} {
  func.func @_stats_kernel(%arg0: i32, %arg1: i32, %arg2: memref<16x32xf32, #tpu.memory_space<vmem>>, %arg3: memref<32x128xf32, #tpu.memory_space<vmem>>, %arg4: memref<8x128xf32, #tpu.memory_space<vmem>>, %arg5: memref<8x128xf32, #tpu.memory_space<vmem>>) attributes {dimension_semantics = [#tpu.dimension_semantics<parallel>, #tpu.dimension_semantics<arbitrary>], iteration_bounds = array<i64: 1, 1>, scalar_prefetch = 0 : i64, scratch_operands = 0 : i64, tpu.core_type = #tpu.core_type<tc>, window_params = [{transform_indices = @transform_0, window_bounds = array<i64: 16, 32>}, {pipeline_mode = #tpu.pipeline_mode<synchronous>, transform_indices = @transform_1, window_bounds = array<i64: 32, 128>}, {transform_indices = @transform_2, window_bounds = array<i64: 8, 128>}, {transform_indices = @transform_3, window_bounds = array<i64: 8, 128>}]} {
    %c0_i32 = arith.constant 0 : i32
    %0 = arith.cmpi eq, %arg1, %c0_i32 : i32
    %1 = arith.extui %0 : i1 to i32
    %c0_i32_0 = arith.constant 0 : i32
    %2 = arith.cmpi ne, %1, %c0_i32_0 : i32
    scf.if %2 {
      %cst_14 = arith.constant 0.000000e+00 : f32
      %16 = vector.broadcast %cst_14 : f32 to vector<8x128xf32>
      %c0_15 = arith.constant 0 : index
      %c0_16 = arith.constant 0 : index
      %17 = vector.load %arg4[%c0_15, %c0_16] : memref<8x128xf32, #tpu.memory_space<vmem>>, vector<8x128xf32>
      tpu.vector_store %arg4[%c0_15, %c0_16], %16 {strides = array<i32>} : memref<8x128xf32, #tpu.memory_space<vmem>>, vector<8x128xf32>,
      %cst_17 = arith.constant 0.000000e+00 : f32
      %18 = vector.broadcast %cst_17 : f32 to vector<8x128xf32>
      %c0_18 = arith.constant 0 : index
      %c0_19 = arith.constant 0 : index
      %19 = vector.load %arg5[%c0_18, %c0_19] : memref<8x128xf32, #tpu.memory_space<vmem>>, vector<8x128xf32>
      tpu.vector_store %arg5[%c0_18, %c0_19], %18 {strides = array<i32>} : memref<8x128xf32, #tpu.memory_space<vmem>>, vector<8x128xf32>,
    } else {
    }
    %c0 = arith.constant 0 : index
    %c0_1 = arith.constant 0 : index
    %3 = vector.load %arg2[%c0, %c0_1] : memref<16x32xf32, #tpu.memory_space<vmem>>, vector<16x32xf32>
    %c0_2 = arith.constant 0 : index
    %c0_3 = arith.constant 0 : index
    %4 = vector.load %arg3[%c0_2, %c0_3] : memref<32x128xf32, #tpu.memory_space<vmem>>, vector<32x128xf32>
    %cst = arith.constant dense<0.000000e+00> : vector<16x128xf32>
    %5 = tpu.matmul %3, %4, %cst {dimension_numbers = #tpu.dot_dimension_numbers<[1], [0], [0], [1], [0, 0, 1, 1], [], []>} : vector<16x32xf32>, vector<32x128xf32>, vector<16x128xf32> -> vector<16x128xf32>
    %6 = vector.shape_cast %5 : vector<16x128xf32> to vector<2x8x128xf32>
    %c0_4 = arith.constant 0 : index
    %c0_5 = arith.constant 0 : index
    %7 = vector.load %arg4[%c0_4, %c0_5] : memref<8x128xf32, #tpu.memory_space<vmem>>, vector<8x128xf32>
    %cst_6 = arith.constant dense<0.000000e+00> : vector<8x128xf32>
    %8 = vector.multi_reduction <add>, %6, %cst_6 [0] : vector<2x8x128xf32> to vector<8x128xf32>
    %9 = arith.addf %7, %8 : vector<8x128xf32>
    %c0_7 = arith.constant 0 : index
    %c0_8 = arith.constant 0 : index
    %10 = vector.load %arg4[%c0_7, %c0_8] : memref<8x128xf32, #tpu.memory_space<vmem>>, vector<8x128xf32>
    tpu.vector_store %arg4[%c0_7, %c0_8], %9 {strides = array<i32>} : memref<8x128xf32, #tpu.memory_space<vmem>>, vector<8x128xf32>,
    %c0_9 = arith.constant 0 : index
    %c0_10 = arith.constant 0 : index
    %11 = vector.load %arg5[%c0_9, %c0_10] : memref<8x128xf32, #tpu.memory_space<vmem>>, vector<8x128xf32>
    %12 = arith.mulf %6, %6 : vector<2x8x128xf32>
    %cst_11 = arith.constant dense<0.000000e+00> : vector<8x128xf32>
    %13 = vector.multi_reduction <add>, %12, %cst_11 [0] : vector<2x8x128xf32> to vector<8x128xf32>
    %14 = arith.addf %11, %13 : vector<8x128xf32>
    %c0_12 = arith.constant 0 : index
    %c0_13 = arith.constant 0 : index
    %15 = vector.load %arg5[%c0_12, %c0_13] : memref<8x128xf32, #tpu.memory_space<vmem>>, vector<8x128xf32>
    tpu.vector_store %arg5[%c0_12, %c0_13], %14 {strides = array<i32>} : memref<8x128xf32, #tpu.memory_space<vmem>>, vector<8x128xf32>,
    return
  }
  func.func @transform_0(%arg0: i32, %arg1: i32) -> (i32, i32) {
    %c1_i32 = arith.constant 1 : i32
    %0 = arith.muli %arg0, %c1_i32 : i32
    %1 = arith.addi %0, %arg1 : i32
    %c0_i32 = arith.constant 0 : i32
    %2 = arith.minsi %1, %c0_i32 : i32
    %c0_i32_0 = arith.constant 0 : i32
    %c0_i32_1 = arith.constant 0 : i32
    return %2, %c0_i32_0 : i32, i32
  }
  func.func @transform_1(%arg0: i32, %arg1: i32) -> (i32, i32) {
    %c0_i32 = arith.constant 0 : i32
    %c0_i32_0 = arith.constant 0 : i32
    %c0_i32_1 = arith.constant 0 : i32
    return %c0_i32, %c0_i32_0 : i32, i32
  }
  func.func @transform_2(%arg0: i32, %arg1: i32) -> (i32, i32) {
    %c0_i32 = arith.constant 0 : i32
    %c0_i32_0 = arith.constant 0 : i32
    return %arg0, %c0_i32 : i32, i32
  }
  func.func @transform_3(%arg0: i32, %arg1: i32) -> (i32, i32) {
    %c0_i32 = arith.constant 0 : i32
    %c0_i32_0 = arith.constant 0 : i32
    return %arg0, %c0_i32 : i32, i32
  }
}

</mosaic_0001>

<llo_original>
// kernel: tpu_custom_call.1
$region0: #{tpu_custom_call.1}
  #allocation0 [shape = 'u32[]', space=smem, size = 0x4, offset = 0x4, fixed_abs, tag = 'smem constant byte address 0x4 - core index']
  #allocation1 [shape = 'u32[144,128]{1,0:T(1,128)}', space=vmem, size = 0x12000, scoped, tag = 'internal scratch']
  %s0 = inlined_call_operand.hbm [shape: f32[16,32], index: 0, kind: input, shape index: {}]
  %s1 = inlined_call_operand.hbm [shape: f32[32,128], index: 1, kind: input, shape index: {}]
  %s2 = inlined_call_operand.hbm [shape: f32[8,128], index: 2, kind: output, shape index: {0}]
  %s3 = inlined_call_operand.hbm [shape: f32[8,128], index: 3, kind: output, shape index: {1}]
  %4 = xla_tuple %s2, %s3
  %s5 = sld [smem:[#allocation0]]
  $region38: #{tpu_custom_call.1} parent=0
    _
  %s7 = ssub.s32 1, %s5
  %s8 = scalar_select 0, %s7, %s5
  $region1: #{tpu_custom_call.1} parent=0
    #allocation2 [shape = 'u8[8192]{0}', space=vmem, size = 0x2000, scoped, tag = 'input window, operand 0, single buffered']
    #allocation3 [shape = 's32[1]{0}', space=sflag, size = 0x4, scoped, tag = 'scoped memory for tpu_custom_call.1']
    #allocation4 [shape = 's32[1]{0}', space=sflag, size = 0x4, scoped, tag = 'scoped memory for tpu_custom_call.1']
    #allocation5 [shape = 'u8[16384]{0}', space=vmem, size = 0x4000, scoped, tag = 'input window, operand 1, single buffered']
    #allocation6 [shape = 's32[1]{0}', space=sflag, size = 0x4, scoped, tag = 'scoped memory for tpu_custom_call.1']
    #allocation7 [shape = 'u8[4096]{0}', space=vmem, size = 0x1000, scoped, tag = 'output window, operand 0, single buffered']
    #allocation8 [shape = 'u8[4096]{0}', space=vmem, size = 0x1000, scoped, tag = 'output window, operand 1, single buffered']
    #allocation9 [shape = 's32[1]{0}', space=sflag, size = 0x4, scoped, tag = 'scoped memory for tpu_custom_call.1']
    %9 = vsyncpa [#allocation3], 0
    %10 = vsyncpa [#allocation6], 0
    %11 = vsyncpa [#allocation4], 0
    %12 = vsyncpa [#allocation9], 0
    // Predicated region
    $region2: #{tpu_custom_call.1} parent=1 // pred_check
      _
    $region3: #{tpu_custom_call.1} parent=1 // pred_check_branch
      %14 = sbr.rel (0) target = $region5
    $region4: #{tpu_custom_call.1} parent=1 // pred_region
      %s15 = sadd.s32 0, 0
      %p16 = scmp.lt.s32.totalorder %s15, 0
      %s17 = scalar_select %p16, %s15, 0
      %s18 = smul.u32 2, %s17
      %s20 = ssub.s32 256, 256
      %21 = vsyncadd [#allocation3], %s20
      %s22 = smul.addr %s18, 128
      %s23 = scalar_lea.hbm %s0, %s22
      %s24 = sshll.u32 [#allocation2], 4
      %s25 = int_to_ptr.vmem [resolvable:$true] %s24
      %30 = dma.hbm_to_vmem [thread:$0]  %s23, 256, %s25, [#allocation3], 128, 128, 8
    $region5: #{tpu_custom_call.1} parent=1 // pred_fallthru
      _
    // Predicated region
    $region6: #{tpu_custom_call.1} parent=1 // pred_check
      _
    $region7: #{tpu_custom_call.1} parent=1 // pred_check_branch
      %32 = sbr.rel (0) target = $region9
    $region8: #{tpu_custom_call.1} parent=1 // pred_region
      %s34 = ssub.s32 512, 512
      %35 = vsyncadd [#allocation6], %s34
      %s36 = sshll.u32 [#allocation5], 4
      %s37 = int_to_ptr.vmem [resolvable:$true] %s36
      %42 = dma.hbm_to_vmem [thread:$0]  %s1, 512, %s37, [#allocation6], 128, 128, 8
    $region9: #{tpu_custom_call.1} parent=1 // pred_fallthru
      _
    // Predicated region
    $region10: #{tpu_custom_call.1} parent=1 // pred_check
      _
    $region11: #{tpu_custom_call.1} parent=1 // pred_check_branch
      %44 = sbr.rel (0) target = $region13
    $region12: #{tpu_custom_call.1} parent=1 // pred_region
      %45 = dma.done [#allocation3], 256
    $region13: #{tpu_custom_call.1} parent=1 // pred_fallthru
      _
    // Predicated region
    $region14: #{tpu_custom_call.1} parent=1 // pred_check
      _
    $region15: #{tpu_custom_call.1} parent=1 // pred_check_branch
      %47 = sbr.rel (0) target = $region17
    $region16: #{tpu_custom_call.1} parent=1 // pred_region
      %48 = dma.done [#allocation6], 512
    $region17: #{tpu_custom_call.1} parent=1 // pred_fallthru
      _
    %s49 = sadd.s32 0, 0
    %p50 = scmp.lt.s32.totalorder %s49, 0
    %s51 = scalar_select %p50, %s49, 0
    %s52 = smul.u32 2, %s51
    %p53 = scmp.eq.s32.totalorder 0, 0
    // Predicated region
    $region18: #{tpu_custom_call.1} parent=1 // pred_check
      %p54 = pneg %p53
    $region19: #{tpu_custom_call.1} parent=1 // pred_check_branch
      %56 = sbr.rel (%p54) target = $region21
    $region20: #{tpu_custom_call.1} parent=1 // pred_region
      %57 = vst [vmem:[#allocation7] sm:$0xff] 0.0
      %58 = vst [vmem:[#allocation8] sm:$0xff] 0.0
    $region21: #{tpu_custom_call.1} parent=1 // pred_fallthru
      _
    %v59 = vld [vmem:[#allocation2] sm:$0xff]
    %v60 = vld [vmem:[#allocation2 + $0x8] sm:$0xff]
    %v61 = vld [vmem:[#allocation5] sm:$0xff]
    %v62 = vld [vmem:[#allocation5 + $0x8] sm:$0xff]
    %v63 = vld [vmem:[#allocation5 + $0x10] sm:$0xff]
    %v64 = vld [vmem:[#allocation5 + $0x18] sm:$0xff]
    %vm65 = vcmask 261120
    %v67 = vsel %vm65, %v59, 0
    %v70 = vsel %vm65, %v60, 0
    %72 = vmatprep.subr.mxu0 0.0
    %73 = vmatpush1.msra.mxu0 0.0
    %74 = vmatprep.subr.mxu0 0.0
    %75 = vmatpush1.msra.mxu0 0.0
    %76 = vmatprep.subr.mxu0 0.0
    %77 = vmatpush1.msra.mxu0 0.0
    %78 = vmatprep.subr.mxu0 0.0
    %79 = vmatpush1.msra.mxu0 0.0
    %80 = vmatprep.subr.mxu0 0.0
    %81 = vmatpush1.msra.mxu0 0.0
    %82 = vmatprep.subr.mxu0 0.0
    %83 = vmatpush1.msra.mxu0 0.0
    %84 = vmatprep.subr.mxu0 0.0
    %85 = vmatpush1.msra.mxu0 0.0
    %86 = vmatprep.subr.mxu0 0.0
    %87 = vmatpush1.msra.mxu0 0.0
    %88 = vmatprep.subr.mxu0 0.0
    %89 = vmatpush1.msra.mxu0 0.0
    %90 = vmatprep.subr.mxu0 0.0
    %91 = vmatpush1.msra.mxu0 0.0
    %92 = vmatprep.subr.mxu0 0.0
    %93 = vmatpush1.msra.mxu0 0.0
    %94 = vmatprep.subr.mxu0 0.0
    %95 = vmatpush1.msra.mxu0 0.0
    %96 = vmatprep.subr.mxu0 0.0
    %97 = vmatpush1.msra.mxu0 %v64
    %98 = vmatprep.subr.mxu0 0.0
    %99 = vmatpush1.msra.mxu0 %v63
    %100 = vmatprep.subr.mxu0 0.0
    %101 = vmatpush1.msra.mxu0 %v62
    %102 = vmatprep.subr.mxu0 0.0
    %103 = vmatpush1.msra.mxu0 %v61
    %104 = vmatprep.subr.mxu0 0.0
    %105 = vmatpush2.msra.mxu0 0.0
    %106 = vmatprep.subr.mxu0 0.0
    %107 = vmatpush2.msra.mxu0 0.0
    %108 = vmatprep.subr.mxu0 0.0
    %109 = vmatpush2.msra.mxu0 0.0
    %110 = vmatprep.subr.mxu0 0.0
    %111 = vmatpush2.msra.mxu0 0.0
    %112 = vmatprep.subr.mxu0 0.0
    %113 = vmatpush2.msra.mxu0 0.0
    %114 = vmatprep.subr.mxu0 0.0
    %115 = vmatpush2.msra.mxu0 0.0
    %116 = vmatprep.subr.mxu0 0.0
    %117 = vmatpush2.msra.mxu0 0.0
    %118 = vmatprep.subr.mxu0 0.0
    %119 = vmatpush2.msra.mxu0 0.0
    %120 = vmatprep.subr.mxu0 0.0
    %121 = vmatpush2.msra.mxu0 0.0
    %122 = vmatprep.subr.mxu0 0.0
    %123 = vmatpush2.msra.mxu0 0.0
    %124 = vmatprep.subr.mxu0 0.0
    %125 = vmatpush2.msra.mxu0 0.0
    %126 = vmatprep.subr.mxu0 0.0
    %127 = vmatpush2.msra.mxu0 0.0
    %128 = vmatprep.subr.mxu0 0.0
    %129 = vmatpush2.msra.mxu0 0.0
    %130 = vmatprep.subr.mxu0 0.0
    %131 = vmatpush2.msra.mxu0 0.0
    %132 = vmatprep.subr.mxu0 0.0
    %133 = vmatpush2.msra.mxu0 0.0
    %134 = vmatprep.subr.mxu0 0.0
    %135 = vmatpush2.msra.mxu0 0.0
    %136 = vmatprep.mubr.f32.mxu0 0.0
    %137 = vmatmul.mubr.f32.gmra.mxu0 %v67
    %v138 = vpop.f32.mrf.mxu0
    %v139 = vadd.f32 0.0, %v138
    %v140 = vpop.f32.mrf.mxu0
    %141 = vmatprep.mubr.f32.mxu0 0.0
    %142 = vmatmul.mubr.f32.gmra.mxu0 %v70
    %v143 = vpop.f32.mrf.mxu0
    %v144 = vadd.f32 0.0, %v143
    %v145 = vpop.f32.mrf.mxu0
    %146 = vdwg.mxu0
    %v147 = vld [vmem:[#allocation7] sm:$0xff]
    %v148 = vadd.f32 %v139, %v144
    %v149 = vadd.f32 %v147, %v148
    %150 = vst [vmem:[#allocation7] sm:$0xff] %v149
    %v151 = vld [vmem:[#allocation8] sm:$0xff]
    %v152 = vmul.f32 %v139, %v139
    %v153 = vmul.f32 %v144, %v144
    %v154 = vadd.f32 %v152, %v153
    %v155 = vadd.f32 %v151, %v154
    %156 = vst [vmem:[#allocation8] sm:$0xff] %v155
    // Predicated region
    $region22: #{tpu_custom_call.1} parent=1 // pred_check
      _
    $region23: #{tpu_custom_call.1} parent=1 // pred_check_branch
      %158 = sbr.rel (0) target = $region25
    $region24: #{tpu_custom_call.1} parent=1 // pred_region
      %s160 = ssub.s32 128, 128
      %161 = vsyncadd [#allocation4], %s160
      %s163 = sshll.u32 [#allocation7], 4
      %s164 = int_to_ptr.vmem [resolvable:$true] %s163
      %166 = dma.vmem_to_hbm [thread:$0]  %s164, 128, %s2, [#allocation4]
    $region25: #{tpu_custom_call.1} parent=1 // pred_fallthru
      _
    // Predicated region
    $region26: #{tpu_custom_call.1} parent=1 // pred_check
      _
    $region27: #{tpu_custom_call.1} parent=1 // pred_check_branch
      %168 = sbr.rel (0) target = $region29
    $region28: #{tpu_custom_call.1} parent=1 // pred_region
      %s170 = ssub.s32 128, 128
      %171 = vsyncadd [#allocation9], %s170
      %s173 = sshll.u32 [#allocation8], 4
      %s174 = int_to_ptr.vmem [resolvable:$true] %s173
      %176 = dma.vmem_to_hbm [thread:$0]  %s174, 128, %s3, [#allocation9]
    $region29: #{tpu_custom_call.1} parent=1 // pred_fallthru
      _
    // Predicated region
    $region30: #{tpu_custom_call.1} parent=1 // pred_check
      _
    $region31: #{tpu_custom_call.1} parent=1 // pred_check_branch
      %178 = sbr.rel (0) target = $region33
    $region32: #{tpu_custom_call.1} parent=1 // pred_region
      %179 = dma.done [#allocation4], 128
    $region33: #{tpu_custom_call.1} parent=1 // pred_fallthru
      _
    // Predicated region
    $region34: #{tpu_custom_call.1} parent=1 // pred_check
      _
    $region35: #{tpu_custom_call.1} parent=1 // pred_check_branch
      %181 = sbr.rel (0) target = $region37
    $region36: #{tpu_custom_call.1} parent=1 // pred_region
      %182 = dma.done [#allocation9], 128
    $region37: #{tpu_custom_call.1} parent=1 // pred_fallthru
      _
    %183 = vsyncpa [#allocation3], 1
    %184 = vsyncpa [#allocation6], 1
    %185 = vsyncpa [#allocation4], 1
    %186 = vsyncpa [#allocation9], 1

</llo_original>
